<compile_context>
chip_gen: v5e
topology: v5e:2x2
jax: 0.10.0
libtpu: 0.0.40
codegen_flags: <defaults>
</compile_context>

<pallas_src>
import functools

import jax
import jax.numpy as jnp
from jax import lax
from jax.experimental import pallas as pl
from jax.experimental.pallas import tpu as pltpu

LANE = 128


def _round_up(x, m):
    return ((x + m - 1) // m) * m


def _vmem_limit_bytes():
    """Scoped-VMEM budget derived from the actual chip, with a safe fallback."""
    try:
        cap = int(pltpu.get_tpu_info().vmem_capacity_bytes)
    except Exception:
        cap = 64 * 1024 * 1024
    return max(16 * 1024 * 1024, min(int(0.75 * cap), 96 * 1024 * 1024))


# ---------------------------------------------------------------------------
# Kernel 1: surrogate backbone.  Per (image, row-chunk) grid step:
#   - build the 9 conv taps in a VMEM rhs buffer from the halo'd NCHW chunk,
#   - one MXU matmul (C_pad, K_pad) @ (K_pad, W) per output row,
#   - bias + ReLU + f32 GAP partial-sum accumulate,
#   - one cross-lane reduce at the end -> (C_pad, 1) partial sum to HBM.
# Every grid step is independent => both grid axes are "parallel".
# ---------------------------------------------------------------------------
def _conv_gap_kernel(x_ref, w_ref, b_ref, out_ref, rhs_ref, acc_ref, *,
                     cin, w_out, ch, h_out):
    # Fresh per-step state (scratch persists across steps, so re-init here).
    acc_ref[...] = jnp.zeros_like(acc_ref)
    rhs_ref[...] = jnp.zeros_like(rhs_ref)      # zero K-pad rows (never rewritten)

    wm = w_ref[...]                             # (C_pad, K_pad) conv weights (lhs)
    bv = b_ref[...]                             # (C_pad, 1) bias, f32

    # Rows past the true image height are simply not iterated (no mask needed).
    base_row = pl.program_id(1) * ch
    nrows = jnp.maximum(jnp.minimum(h_out - base_row, ch), 0)

    def row_body(r, carry):
        # rhs[k, w] = x[c, r + di, dj + w] with k = c*9 + dj*3 + di:
        # nine small (3, W) sublane copies -> taps built in VMEM, no HBM im2col.
        for c in range(cin):
            for dj in range(3):
                rhs_ref[pl.ds(c * 9 + dj * 3, 3), :] = (
                    x_ref[0, c, pl.ds(r, 3), dj:dj + w_out])
        # One MXU matmul per output row: (C_pad, K_pad) @ (K_pad, W) -> (C_pad, W).
        y = jnp.dot(wm, rhs_ref[...], preferred_element_type=jnp.float32)
        y = jnp.maximum(y + bv, 0.0)            # bias + ReLU (f32)
        acc_ref[...] += y                       # GAP partial sum (one add/elem)
        return carry

    lax.fori_loop(0, nrows, row_body, 0)
    # Cross-lane reduce once per chunk (not per row).
    out_ref[0] = jnp.sum(acc_ref[...], axis=1, keepdims=True)


# ---------------------------------------------------------------------------
# Kernel 2: EncoderCNN head — batched fc -> ReLU -> inverted Dropout(p).
# Whole (small) operands live in VMEM; no grid.
# ---------------------------------------------------------------------------
def _head_kernel(feat_ref, fcw_ref, fcb_ref, bits_ref, out_ref, *,
                 training, keep_thresh, inv_keep):
    f = feat_ref[...].astype(fcw_ref.dtype)
    h = jnp.dot(f, fcw_ref[...], preferred_element_type=jnp.float32)
    h = jnp.maximum(h + fcb_ref[...], 0.0)
    if training:
        # Inverted dropout: keep iff uniform uint32 bits >= p * 2^32.
        keep = bits_ref[...] >= jnp.uint32(keep_thresh)
        h = jnp.where(keep, h * inv_keep, 0.0)
    out_ref[...] = h.astype(out_ref.dtype)


def encoder_cnn_forward(images_nchw, conv_w_hwio, conv_b, fc_w, fc_b, *,
                        dropout_key=None, training=True, p_drop=0.5,
                        rows_per_chunk=64, compute_dtype=jnp.bfloat16):
    """EncoderCNN forward.  images_nchw: [N, Cin, H, W] float32 (PyTorch NCHW)."""
    n, cin, h_img, w_img = images_nchw.shape
    assert conv_w_hwio.shape[:3] == (3, 3, cin), conv_w_hwio.shape
    feat_c = conv_w_hwio.shape[3]
    embed = fc_w.shape[1]

    c_pad = _round_up(feat_c, 8)        # conv output channels (sublane dim)
    e_pad = _round_up(embed, LANE)      # lane-dense head output
    k_pad = _round_up(9 * cin, 8)       # conv contraction (9 taps * Cin)
    wp = w_img + 2                      # "SAME" 3x3 conv padded width

    vmem_limit = _vmem_limit_bytes()

    # --- row chunking (replaces the old _pick_row_tile + its hw fallback) ----
    # Cap rows/chunk so the double-buffered image block stays far below the
    # per-core VMEM budget (matters most on v7x's 64 MiB).
    itemsize = jnp.dtype(compute_dtype).itemsize
    row_bytes = cin * _round_up(wp, LANE) * itemsize
    max_rows = max(8, (vmem_limit // 4) // max(2 * row_bytes, 1))
    ch = max(1, min(rows_per_chunk, max_rows, h_img))
    n_chunks = -(-h_img // ch)
    if n_chunks == 1 and h_img >= 2:
        # Keep >= 2 independent parallel chunks so both v7x TensorCores get
        # work even when N == 1 (harmless on v5e/v6e).
        ch = -(-h_img // 2)
        n_chunks = 2

    # --- glue: spatial zero-pad + split into row chunks with a 2-row halo ----
    # HBM traffic ~= the raw NCHW image (plus 2 halo rows per chunk); no 9x tap
    # duplication and no K->128 padding in HBM.
    xp = jnp.pad(images_nchw, ((0, 0), (0, 0), (1, 1), (1, 1)))
    pad_rows = n_chunks * ch + 2 - (h_img + 2)
    if pad_rows:
        xp = jnp.pad(xp, ((0, 0), (0, 0), (0, pad_rows), (0, 0)))
    x_chunks = jnp.stack(
        [xp[:, :, c * ch:c * ch + ch + 2, :] for c in range(n_chunks)], axis=1)
    x_chunks = x_chunks.reshape(n * n_chunks, cin, ch + 2, wp).astype(compute_dtype)

    # Conv weights as the matmul lhs [C_pad, k] with k = cin*9 + dj*3 + di.
    w_lhs = jnp.transpose(conv_w_hwio, (3, 2, 1, 0)).reshape(feat_c, 9 * cin)
    w_lhs = jnp.pad(w_lhs, ((0, c_pad - feat_c), (0, k_pad - 9 * cin)))
    w_lhs = w_lhs.astype(compute_dtype)
    b_col = jnp.pad(conv_b, (0, c_pad - feat_c)).reshape(c_pad, 1).astype(jnp.float32)

    conv_kernel = functools.partial(
        _conv_gap_kernel, cin=cin, w_out=w_img, ch=ch, h_out=h_img)

    partial_sums = pl.pallas_call(
        conv_kernel,
        out_shape=jax.ShapeDtypeStruct((n * n_chunks, c_pad, 1), jnp.float32),
        grid=(n, n_chunks),
        in_specs=[
            # halo'd image chunk, streamed & double-buffered by BlockSpec
            pl.BlockSpec((1, cin, ch + 2, wp),
                         lambda i, c, _nc=n_chunks: (i * _nc + c, 0, 0, 0)),
            # tiny constant operands (KBs) -- cheap to keep resident
            pl.BlockSpec((c_pad, k_pad), lambda i, c: (0, 0)),
            pl.BlockSpec((c_pad, 1), lambda i, c: (0, 0)),
        ],
        out_specs=pl.BlockSpec((1, c_pad, 1),
                               lambda i, c, _nc=n_chunks: (i * _nc + c, 0, 0)),
        scratch_shapes=[
            pltpu.VMEM((k_pad, w_img), compute_dtype),   # rhs tap buffer
            pltpu.VMEM((c_pad, w_img), jnp.float32),     # GAP accumulator
        ],
        compiler_params=pltpu.CompilerParams(
            dimension_semantics=("parallel", "parallel"),
            vmem_limit_bytes=vmem_limit,
        ),
    )(x_chunks, w_lhs, b_col)

    # Combine per-chunk partial sums into the pooled feature vector (KBs).
    feats = partial_sums.reshape(n, n_chunks, c_pad).sum(axis=1)
    feats = feats * (1.0 / float(h_img * w_img))          # GAP mean, f32

    # --- head: fc -> ReLU -> inverted Dropout as one batched (N,C) @ (C,E) ----
    fc_w_p = jnp.pad(fc_w, ((0, c_pad - feat_c), (0, e_pad - embed)))
    fc_w_p = fc_w_p.astype(compute_dtype)                 # bf16 weights, f32 acc
    fc_b_p = jnp.pad(fc_b, (0, e_pad - embed)).reshape(1, e_pad).astype(jnp.float32)

    # Dropout bits from an explicit JAX key (portable; no in-kernel PRNG).
    if dropout_key is None:
        dropout_key = jax.random.PRNGKey(0)
    bits = jax.random.bits(dropout_key, (n, e_pad), dtype=jnp.uint32)

    keep_thresh = min(int(p_drop * (1 << 32)), (1 << 32) - 1)
    inv_keep = 1.0 / (1.0 - p_drop) if p_drop < 1.0 else 0.0

    head_kernel = functools.partial(
        _head_kernel, training=bool(training),
        keep_thresh=keep_thresh, inv_keep=inv_keep)

    out = pl.pallas_call(
        head_kernel,
        out_shape=jax.ShapeDtypeStruct((n, e_pad), jnp.float32),
    )(feats, fc_w_p, fc_b_p, bits)

    return out[:, :embed]


# ---------------------------------------------------------------------------
# Pure-JAX reference (eval mode, no dropout) for correctness checking.
# ---------------------------------------------------------------------------
def _reference_forward(images_nchw, conv_w_hwio, conv_b, fc_w, fc_b):
    y = lax.conv_general_dilated(
        images_nchw, conv_w_hwio, window_strides=(1, 1), padding="SAME",
        dimension_numbers=("NCHW", "HWIO", "NCHW"),
        precision=lax.Precision.HIGHEST)
    y = jnp.maximum(y + conv_b[None, :, None, None], 0.0)
    feat = jnp.mean(y, axis=(2, 3))                                  # GAP
    fc = jnp.dot(feat, fc_w, precision=lax.Precision.HIGHEST) + fc_b
    return jnp.maximum(fc, 0.0)                                      # ReLU


if __name__ == "__main__":
    key = jax.random.PRNGKey(0)
    k_img, k_cw, k_cb, k_fw, k_fb, k_drop = jax.random.split(key, 6)

    # Small shapes consistent with the forward: RGB NCHW images in, [N, embed] out.
    N, CIN, H, W = 2, 3, 16, 16
    FEAT_C = 32     # stand-in for inception.fc.in_features (2048 in real model)
    EMBED = 64      # embed_size

    images = jax.random.normal(k_img, (N, CIN, H, W), jnp.float32)
    conv_w = jax.random.normal(k_cw, (3, 3, CIN, FEAT_C), jnp.float32) * 0.1
    # Nonzero conv bias: a padded-row masking bug would corrupt the GAP mean.
    conv_b = jax.random.normal(k_cb, (FEAT_C,), jnp.float32) * 0.05
    fc_w = jax.random.normal(k_fw, (FEAT_C, EMBED), jnp.float32) / jnp.sqrt(FEAT_C)
    fc_b = jax.random.normal(k_fb, (EMBED,), jnp.float32) * 0.01

    # 1) Strict numeric check: eval mode (no dropout), f32 end-to-end.
    #    rows_per_chunk=6 -> 3 chunks covering 18 rows for H=16, so the
    #    dynamic-trip-count handling of padded rows is exercised.
    out_eval = encoder_cnn_forward(images, conv_w, conv_b, fc_w, fc_b,
                                   training=False, rows_per_chunk=6,
                                   compute_dtype=jnp.float32)
    out_eval = jax.block_until_ready(out_eval)
    ref_eval = _reference_forward(images, conv_w, conv_b, fc_w, fc_b)
    assert out_eval.shape == (N, EMBED), out_eval.shape
    assert out_eval.dtype == jnp.float32
    max_err = float(jnp.max(jnp.abs(out_eval - ref_eval)))
    assert jnp.allclose(out_eval, ref_eval, rtol=1e-4, atol=1e-4), max_err

    # 2) Training mode: dropout on, bf16 streamed operands (f32 accumulation).
    out_train = encoder_cnn_forward(images, conv_w, conv_b, fc_w, fc_b,
                                    dropout_key=k_drop, training=True,
                                    p_drop=0.5, rows_per_chunk=8,
                                    compute_dtype=jnp.bfloat16)
    out_train = jax.block_until_ready(out_train)
    assert out_train.shape == (N, EMBED), out_train.shape
    # ReLU + inverted dropout => all outputs non-negative and finite.
    assert bool(jnp.all(out_train >= 0.0))
    assert bool(jnp.all(jnp.isfinite(out_train)))

    print("KERNEL_OK")
</pallas_src>

<mosaic_0001>
module attributes {stable_mosaic.version = 11 : i64} {
  func.func @_conv_gap_kernel(%arg0: i32, %arg1: i32, %arg2: memref<1x3x8x18xf32, #tpu.memory_space<vmem>>, %arg3: memref<32x32xf32, #tpu.memory_space<vmem>>, %arg4: memref<32x1xf32, #tpu.memory_space<vmem>>, %arg5: memref<1x32x1xf32, #tpu.memory_space<vmem>>, %arg6: memref<32x16xf32, #tpu.memory_space<vmem>>, %arg7: memref<32x16xf32, #tpu.memory_space<vmem>>) attributes {dimension_semantics = [#tpu.dimension_semantics<parallel>, #tpu.dimension_semantics<parallel>], iteration_bounds = array<i64: 2, 3>, scalar_prefetch = 0 : i64, scratch_operands = 2 : i64, tpu.core_type = #tpu.core_type<tc>, window_params = [{transform_indices = @transform_0, window_bounds = array<i64: 1, 3, 8, 18>}, {pipeline_mode = #tpu.pipeline_mode<synchronous>, transform_indices = @transform_1, window_bounds = array<i64: 32, 32>}, {pipeline_mode = #tpu.pipeline_mode<synchronous>, transform_indices = @transform_2, window_bounds = array<i64: 32, 1>}, {transform_indices = @transform_3, window_bounds = array<i64: 1, 32, 1>}]} {
    %cst = arith.constant 0.000000e+00 : f32
    %0 = vector.broadcast %cst : f32 to vector<32x16xf32>
    %c0 = arith.constant 0 : index
    %c0_0 = arith.constant 0 : index
    %1 = vector.load %arg7[%c0, %c0_0] : memref<32x16xf32, #tpu.memory_space<vmem>>, vector<32x16xf32>
    tpu.vector_store %arg7[%c0, %c0_0], %0 {strides = array<i32>} : memref<32x16xf32, #tpu.memory_space<vmem>>, vector<32x16xf32>,
    %cst_1 = arith.constant 0.000000e+00 : f32
    %2 = vector.broadcast %cst_1 : f32 to vector<32x16xf32>
    %c0_2 = arith.constant 0 : index
    %c0_3 = arith.constant 0 : index
    %3 = vector.load %arg6[%c0_2, %c0_3] : memref<32x16xf32, #tpu.memory_space<vmem>>, vector<32x16xf32>
    tpu.vector_store %arg6[%c0_2, %c0_3], %2 {strides = array<i32>} : memref<32x16xf32, #tpu.memory_space<vmem>>, vector<32x16xf32>,
    %c0_4 = arith.constant 0 : index
    %c0_5 = arith.constant 0 : index
    %4 = vector.load %arg3[%c0_4, %c0_5] : memref<32x32xf32, #tpu.memory_space<vmem>>, vector<32x32xf32>
    %c0_6 = arith.constant 0 : index
    %c0_7 = arith.constant 0 : index
    %5 = vector.load %arg4[%c0_6, %c0_7] : memref<32x1xf32, #tpu.memory_space<vmem>>, vector<32x1xf32>
    %c6_i32 = arith.constant 6 : i32
    %6 = arith.muli %arg1, %c6_i32 : i32
    %c16_i32 = arith.constant 16 : i32
    %7 = arith.subi %c16_i32, %6 : i32
    %c6_i32_8 = arith.constant 6 : i32
    %8 = arith.minsi %7, %c6_i32_8 : i32
    %c0_i32 = arith.constant 0 : i32
    %9 = arith.maxsi %8, %c0_i32 : i32
    %c0_i32_9 = arith.constant 0 : i32
    %c0_i32_10 = arith.constant 0 : i32
    %10 = arith.subi %9, %c0_i32_10 : i32
    %11 = arith.addi %c0_i32_10, %10 : i32
    %c1_i32 = arith.constant 1 : i32
    scf.for %arg8 = %c0_i32_10 to %11 step %c1_i32  : i32 {
      %c0_17 = arith.constant 0 : index
      %c0_18 = arith.constant 0 : index
      %18 = arith.index_cast %arg8 : i32 to index
      %c0_19 = arith.constant 0 : index
      %19 = vector.load %arg2[%c0_17, %c0_18, %18, %c0_19] : memref<1x3x8x18xf32, #tpu.memory_space<vmem>>, vector<1x1x3x16xf32>
      %20 = vector.shape_cast %19 : vector<1x1x3x16xf32> to vector<3x16xf32>
      %c0_20 = arith.constant 0 : index
      %c0_21 = arith.constant 0 : index
      %21 = vector.load %arg6[%c0_20, %c0_21] : memref<32x16xf32, #tpu.memory_space<vmem>>, vector<3x16xf32>
      tpu.vector_store %arg6[%c0_20, %c0_21], %20 {strides = array<i32>} : memref<32x16xf32, #tpu.memory_space<vmem>>, vector<3x16xf32>,
      %c0_22 = arith.constant 0 : index
      %c0_23 = arith.constant 0 : index
      %22 = arith.index_cast %arg8 : i32 to index
      %c1 = arith.constant 1 : index
      %23 = vector.load %arg2[%c0_22, %c0_23, %22, %c1] : memref<1x3x8x18xf32, #tpu.memory_space<vmem>>, vector<1x1x3x16xf32>
      %24 = vector.shape_cast %23 : vector<1x1x3x16xf32> to vector<3x16xf32>
      %c3 = arith.constant 3 : index
      %c0_24 = arith.constant 0 : index
      %25 = vector.load %arg6[%c3, %c0_24] : memref<32x16xf32, #tpu.memory_space<vmem>>, vector<3x16xf32>
      tpu.vector_store %arg6[%c3, %c0_24], %24 {strides = array<i32>} : memref<32x16xf32, #tpu.memory_space<vmem>>, vector<3x16xf32>,
      %c0_25 = arith.constant 0 : index
      %c0_26 = arith.constant 0 : index
      %26 = arith.index_cast %arg8 : i32 to index
      %c2 = arith.constant 2 : index
      %27 = vector.load %arg2[%c0_25, %c0_26, %26, %c2] : memref<1x3x8x18xf32, #tpu.memory_space<vmem>>, vector<1x1x3x16xf32>
      %28 = vector.shape_cast %27 : vector<1x1x3x16xf32> to vector<3x16xf32>
      %c6 = arith.constant 6 : index
      %c0_27 = arith.constant 0 : index
      %29 = vector.load %arg6[%c6, %c0_27] : memref<32x16xf32, #tpu.memory_space<vmem>>, vector<3x16xf32>
      tpu.vector_store %arg6[%c6, %c0_27], %28 {strides = array<i32>} : memref<32x16xf32, #tpu.memory_space<vmem>>, vector<3x16xf32>,
      %c0_28 = arith.constant 0 : index
      %c1_29 = arith.constant 1 : index
      %30 = arith.index_cast %arg8 : i32 to index
      %c0_30 = arith.constant 0 : index
      %31 = vector.load %arg2[%c0_28, %c1_29, %30, %c0_30] : memref<1x3x8x18xf32, #tpu.memory_space<vmem>>, vector<1x1x3x16xf32>
      %32 = vector.shape_cast %31 : vector<1x1x3x16xf32> to vector<3x16xf32>
      %c9 = arith.constant 9 : index
      %c0_31 = arith.constant 0 : index
      %33 = vector.load %arg6[%c9, %c0_31] : memref<32x16xf32, #tpu.memory_space<vmem>>, vector<3x16xf32>
      tpu.vector_store %arg6[%c9, %c0_31], %32 {strides = array<i32>} : memref<32x16xf32, #tpu.memory_space<vmem>>, vector<3x16xf32>,
      %c0_32 = arith.constant 0 : index
      %c1_33 = arith.constant 1 : index
      %34 = arith.index_cast %arg8 : i32 to index
      %c1_34 = arith.constant 1 : index
      %35 = vector.load %arg2[%c0_32, %c1_33, %34, %c1_34] : memref<1x3x8x18xf32, #tpu.memory_space<vmem>>, vector<1x1x3x16xf32>
      %36 = vector.shape_cast %35 : vector<1x1x3x16xf32> to vector<3x16xf32>
      %c12 = arith.constant 12 : index
      %c0_35 = arith.constant 0 : index
      %37 = vector.load %arg6[%c12, %c0_35] : memref<32x16xf32, #tpu.memory_space<vmem>>, vector<3x16xf32>
      tpu.vector_store %arg6[%c12, %c0_35], %36 {strides = array<i32>} : memref<32x16xf32, #tpu.memory_space<vmem>>, vector<3x16xf32>,
      %c0_36 = arith.constant 0 : index
      %c1_37 = arith.constant 1 : index
      %38 = arith.index_cast %arg8 : i32 to index
      %c2_38 = arith.constant 2 : index
      %39 = vector.load %arg2[%c0_36, %c1_37, %38, %c2_38] : memref<1x3x8x18xf32, #tpu.memory_space<vmem>>, vector<1x1x3x16xf32>
      %40 = vector.shape_cast %39 : vector<1x1x3x16xf32> to vector<3x16xf32>
      %c15 = arith.constant 15 : index
      %c0_39 = arith.constant 0 : index
      %41 = vector.load %arg6[%c15, %c0_39] : memref<32x16xf32, #tpu.memory_space<vmem>>, vector<3x16xf32>
      tpu.vector_store %arg6[%c15, %c0_39], %40 {strides = array<i32>} : memref<32x16xf32, #tpu.memory_space<vmem>>, vector<3x16xf32>,
      %c0_40 = arith.constant 0 : index
      %c2_41 = arith.constant 2 : index
      %42 = arith.index_cast %arg8 : i32 to index
      %c0_42 = arith.constant 0 : index
      %43 = vector.load %arg2[%c0_40, %c2_41, %42, %c0_42] : memref<1x3x8x18xf32, #tpu.memory_space<vmem>>, vector<1x1x3x16xf32>
      %44 = vector.shape_cast %43 : vector<1x1x3x16xf32> to vector<3x16xf32>
      %c18 = arith.constant 18 : index
      %c0_43 = arith.constant 0 : index
      %45 = vector.load %arg6[%c18, %c0_43] : memref<32x16xf32, #tpu.memory_space<vmem>>, vector<3x16xf32>
      tpu.vector_store %arg6[%c18, %c0_43], %44 {strides = array<i32>} : memref<32x16xf32, #tpu.memory_space<vmem>>, vector<3x16xf32>,
      %c0_44 = arith.constant 0 : index
      %c2_45 = arith.constant 2 : index
      %46 = arith.index_cast %arg8 : i32 to index
      %c1_46 = arith.constant 1 : index
      %47 = vector.load %arg2[%c0_44, %c2_45, %46, %c1_46] : memref<1x3x8x18xf32, #tpu.memory_space<vmem>>, vector<1x1x3x16xf32>
      %48 = vector.shape_cast %47 : vector<1x1x3x16xf32> to vector<3x16xf32>
      %c21 = arith.constant 21 : index
      %c0_47 = arith.constant 0 : index
      %49 = vector.load %arg6[%c21, %c0_47] : memref<32x16xf32, #tpu.memory_space<vmem>>, vector<3x16xf32>
      tpu.vector_store %arg6[%c21, %c0_47], %48 {strides = array<i32>} : memref<32x16xf32, #tpu.memory_space<vmem>>, vector<3x16xf32>,
      %c0_48 = arith.constant 0 : index
      %c2_49 = arith.constant 2 : index
      %50 = arith.index_cast %arg8 : i32 to index
      %c2_50 = arith.constant 2 : index
      %51 = vector.load %arg2[%c0_48, %c2_49, %50, %c2_50] : memref<1x3x8x18xf32, #tpu.memory_space<vmem>>, vector<1x1x3x16xf32>
      %52 = vector.shape_cast %51 : vector<1x1x3x16xf32> to vector<3x16xf32>
      %c24 = arith.constant 24 : index
      %c0_51 = arith.constant 0 : index
      %53 = vector.load %arg6[%c24, %c0_51] : memref<32x16xf32, #tpu.memory_space<vmem>>, vector<3x16xf32>
      tpu.vector_store %arg6[%c24, %c0_51], %52 {strides = array<i32>} : memref<32x16xf32, #tpu.memory_space<vmem>>, vector<3x16xf32>,
      %c0_52 = arith.constant 0 : index
      %c0_53 = arith.constant 0 : index
      %54 = vector.load %arg6[%c0_52, %c0_53] : memref<32x16xf32, #tpu.memory_space<vmem>>, vector<32x16xf32>
      %cst_54 = arith.constant dense<0.000000e+00> : vector<32x16xf32>
      %55 = tpu.matmul %4, %54, %cst_54 {dimension_numbers = #tpu.dot_dimension_numbers<[1], [0], [0], [1], [0, 0, 1, 1], [], []>} : vector<32x32xf32>, vector<32x16xf32>, vector<32x16xf32> -> vector<32x16xf32>
      %56 = vector.broadcast %5 : vector<32x1xf32> to vector<32x16xf32>
      %57 = arith.addf %55, %56 : vector<32x16xf32>
      %cst_55 = arith.constant 0.000000e+00 : f32
      %58 = vector.broadcast %cst_55 : f32 to vector<32x16xf32>
      %59 = arith.maximumf %57, %58 : vector<32x16xf32>
      %c0_56 = arith.constant 0 : index
      %c0_57 = arith.constant 0 : index
      %60 = vector.load %arg7[%c0_56, %c0_57] : memref<32x16xf32, #tpu.memory_space<vmem>>, vector<32x16xf32>
      %61 = arith.addf %60, %59 : vector<32x16xf32>
      %c0_58 = arith.constant 0 : index
      %c0_59 = arith.constant 0 : index
      %62 = vector.load %arg7[%c0_58, %c0_59] : memref<32x16xf32, #tpu.memory_space<vmem>>, vector<32x16xf32>
      tpu.vector_store %arg7[%c0_58, %c0_59], %61 {strides = array<i32>} : memref<32x16xf32, #tpu.memory_space<vmem>>, vector<32x16xf32>,
    }
    %c0_11 = arith.constant 0 : index
    %c0_12 = arith.constant 0 : index
    %12 = vector.load %arg7[%c0_11, %c0_12] : memref<32x16xf32, #tpu.memory_space<vmem>>, vector<32x16xf32>
    %cst_13 = arith.constant dense<0.000000e+00> : vector<32xf32>
    %13 = vector.multi_reduction <add>, %12, %cst_13 [1] : vector<32x16xf32> to vector<32xf32>
    %14 = vector.shape_cast %13 : vector<32xf32> to vector<32x1xf32>
    %c0_14 = arith.constant 0 : index
    %c0_15 = arith.constant 0 : index
    %c0_16 = arith.constant 0 : index
    %15 = vector.load %arg5[%c0_14, %c0_15, %c0_16] : memref<1x32x1xf32, #tpu.memory_space<vmem>>, vector<1x32x1xf32>
    %16 = vector.shape_cast %15 : vector<1x32x1xf32> to vector<32x1xf32>
    %17 = vector.shape_cast %14 : vector<32x1xf32> to vector<1x32x1xf32>
    tpu.vector_store %arg5[%c0_14, %c0_15, %c0_16], %17 {strides = array<i32>} : memref<1x32x1xf32, #tpu.memory_space<vmem>>, vector<1x32x1xf32>,
    return
  }
  func.func @transform_0(%arg0: i32, %arg1: i32) -> (i32, i32, i32, i32) {
    %c3_i32 = arith.constant 3 : i32
    %0 = arith.muli %arg0, %c3_i32 : i32
    %1 = arith.addi %0, %arg1 : i32
    %c0_i32 = arith.constant 0 : i32
    %c0_i32_0 = arith.constant 0 : i32
    %c0_i32_1 = arith.constant 0 : i32
    %c0_i32_2 = arith.constant 0 : i32
    return %1, %c0_i32, %c0_i32_0, %c0_i32_1 : i32, i32, i32, i32
  }
  func.func @transform_1(%arg0: i32, %arg1: i32) -> (i32, i32) {
    %c0_i32 = arith.constant 0 : i32
    %c0_i32_0 = arith.constant 0 : i32
    %c0_i32_1 = arith.constant 0 : i32
    return %c0_i32, %c0_i32_0 : i32, i32
  }
  func.func @transform_2(%arg0: i32, %arg1: i32) -> (i32, i32) {
    %c0_i32 = arith.constant 0 : i32
    %c0_i32_0 = arith.constant 0 : i32
    %c0_i32_1 = arith.constant 0 : i32
    return %c0_i32, %c0_i32_0 : i32, i32
  }
  func.func @transform_3(%arg0: i32, %arg1: i32) -> (i32, i32, i32) {
    %c3_i32 = arith.constant 3 : i32
    %0 = arith.muli %arg0, %c3_i32 : i32
    %1 = arith.addi %0, %arg1 : i32
    %c0_i32 = arith.constant 0 : i32
    %c0_i32_0 = arith.constant 0 : i32
    %c0_i32_1 = arith.constant 0 : i32
    return %1, %c0_i32, %c0_i32_0 : i32, i32, i32
  }
}

</mosaic_0001>

<llo_original>
// kernel: tpu_custom_call.1
$region0: #{tpu_custom_call.1}
  #allocation0 [shape = 'u32[]', space=smem, size = 0x4, offset = 0x4, fixed_abs, tag = 'smem constant byte address 0x4 - core index']
  #allocation1 [shape = 'u32[72,128]{1,0:T(1,128)}', space=vmem, size = 0x9000, scoped, tag = 'internal scratch']
  #allocation2 [shape = 'f32[32,16]{1,0:T(8,128)}', space=vmem, size = 0x4000, scoped, tag = 'scratch operand']
  #allocation3 [shape = 'f32[32,16]{1,0:T(8,128)}', space=vmem, size = 0x4000, scoped, tag = 'scratch operand']
  %s0 = inlined_call_operand.hbm [shape: f32[6,3,8,18], index: 0, kind: input, shape index: {}]
  %s1 = inlined_call_operand.vmem [shape: f32[32,32], index: 1, kind: input, shape index: {}]
  %s2 = inlined_call_operand.vmem [shape: f32[32,1], index: 2, kind: input, shape index: {}]
  %s3 = inlined_call_operand.vmem [shape: f32[6,32,1], index: 3, kind: output, shape index: {}]
  %s4 = sld [smem:[#allocation0]]
  $region56: #{tpu_custom_call.1} parent=0
    _
  %s6 = ssub.s32 1, %s4
  %s7 = scalar_select 0, %s6, %s4
  $region1: #{tpu_custom_call.1} parent=0
    #allocation4 [shape = 'u8[24576]{0}', space=vmem, size = 0x6000, scoped, tag = 'input window, operand 0']
    #allocation5 [shape = 's32[2]{0}', space=sflag, size = 0x8, scoped, tag = 'scoped memory for tpu_custom_call.1']
    %8 = vsyncpa [#allocation5], 0
    %s9 = scalar_lea.sflag [#allocation5], 1
    %10 = vsyncpa %s9, 0
    loop: start=0, step=1, limit=8
    $region2: #{tpu_custom_call.1} parent=1 // loop_pre_header
      _
    $region3: #{tpu_custom_call.1} parent=1 // loop_header
      %s12 = sphi 0, %s16
      %p13 = scmp.ge.s32.totalorder %s12, 8
      %s19 = sphi 0, %s31
      %s20 = sphi 0, %s27
      %s21 = sphi 0, %s19
      %s22 = sphi 0, %s20
      %s23 = sphi 0, %s21
      %s24 = sphi 0, %s22
      %s38 = sphi 0, %s40
      %s41 = sphi 0, %s38
      %s42 = sphi 0, %s41
      %s58 = sphi 0, %s42
      %s62 = sphi 0, %s62
      %s64 = sphi 0, %s62
      %s65 = sphi 0, %s64
      %s79 = sphi 0, %s65
      %s83 = sphi 0, %s83
      %s85 = sphi 0, %s83
      %s86 = sphi 0, %s85
      %s100 = sphi 0, %s86
      %s110 = sphi 0, %s112
      %s113 = sphi 0, %s110
      %s114 = sphi 0, %s113
      %s130 = sphi 0, %s114
    $region4: #{tpu_custom_call.1} parent=1 // loop_header_branch
      %15 = sbr.rel (%p13) target = $region8
    $region5: #{tpu_custom_call.1} parent=1 // loop_body
      %s17 = ssub.s32 %s12, 1
      %s18 = ssub.s32 %s12, 2
      %s25 = sadd.s32 1, %s20
      %p26 = scmp.ge.s32.totalorder %s25, 3
      %s27 = scalar_select %p26, 0, %s25
      %s28 = sadd.s32 1, %s19
      %s29 = scalar_select %p26, %s28, %s19
      %p30 = scmp.ge.s32.totalorder %s29, 2
      %s31 = scalar_select %p30, 0, %s29
      %s32 = smul.u32 %s19, 3
      %s33 = sadd.s32 %s32, %s20
      %s34 = smul.u32 %s31, 3
      %s35 = sadd.s32 %s34, %s27
      %s36 = ssub.s32 %s33, %s35
      %p37 = scmp.eq.s32.totalorder %s36, 0
      %s39 = sadd.s32 %s38, 1
      %s40 = scalar_select %p37, %s38, %s39
      %p43 = pneg %p37
      %p44 = scmp.eq.s32.totalorder %s12, 5
      %p45 = por %p43, %p44
      %p46 = scmp.ne.s32.totalorder %s38, %s41
      %p47 = scmp.eq.s32.totalorder %s12, 0
      %p48 = por %p46, %p47
      %p49 = scmp.ne.s32.totalorder %s38, %s41
      %p50 = scmp.eq.s32.totalorder %s17, 5
      %p51 = por %p49, %p50
      %p52 = scmp.ne.s32.totalorder %s41, %s42
      %p53 = scmp.eq.s32.totalorder %s17, 0
      %p54 = por %p52, %p53
      %p55 = scmp.ne.s32.totalorder %s41, %s42
      %p56 = scmp.eq.s32.totalorder %s18, 5
      %p57 = por %p55, %p56
      %p59 = scmp.ne.s32.totalorder %s42, %s58
      %p60 = scmp.eq.s32.totalorder %s18, 0
      %p61 = por %p59, %p60
      %s63 = sadd.s32 %s62, 1
      %p66 = scmp.eq.s32.totalorder %s12, 5
      %p67 = scmp.ne.s32.totalorder %s62, %s64
      %p68 = scmp.eq.s32.totalorder %s12, 0
      %p69 = por %p67, %p68
      %p70 = scmp.ne.s32.totalorder %s62, %s64
      %p71 = scmp.eq.s32.totalorder %s17, 5
      %p72 = por %p70, %p71
      %p73 = scmp.ne.s32.totalorder %s64, %s65
      %p74 = scmp.eq.s32.totalorder %s17, 0
      %p75 = por %p73, %p74
      %p76 = scmp.ne.s32.totalorder %s64, %s65
      %p77 = scmp.eq.s32.totalorder %s18, 5
      %p78 = por %p76, %p77
      %p80 = scmp.ne.s32.totalorder %s65, %s79
      %p81 = scmp.eq.s32.totalorder %s18, 0
      %p82 = por %p80, %p81
      %s84 = sadd.s32 %s83, 1
      %p87 = scmp.eq.s32.totalorder %s12, 5
      %p88 = scmp.ne.s32.totalorder %s83, %s85
      %p89 = scmp.eq.s32.totalorder %s12, 0
      %p90 = por %p88, %p89
      %p91 = scmp.ne.s32.totalorder %s83, %s85
      %p92 = scmp.eq.s32.totalorder %s17, 5
      %p93 = por %p91, %p92
      %p94 = scmp.ne.s32.totalorder %s85, %s86
      %p95 = scmp.eq.s32.totalorder %s17, 0
      %p96 = por %p94, %p95
      %p97 = scmp.ne.s32.totalorder %s85, %s86
      %p98 = scmp.eq.s32.totalorder %s18, 5
      %p99 = por %p97, %p98
      %p101 = scmp.ne.s32.totalorder %s86, %s100
      %p102 = scmp.eq.s32.totalorder %s18, 0
      %p103 = por %p101, %p102
      %s104 = smul.u32 %s19, 3
      %s105 = sadd.s32 %s104, %s20
      %s106 = smul.u32 %s31, 3
      %s107 = sadd.s32 %s106, %s27
      %s108 = ssub.s32 %s105, %s107
      %p109 = scmp.eq.s32.totalorder %s108, 0
      %s111 = sadd.s32 %s110, 1
      %s112 = scalar_select %p109, %s110, %s111
      %p115 = pneg %p109
      %p116 = scmp.eq.s32.totalorder %s12, 5
      %p117 = por %p115, %p116
      %p118 = scmp.ne.s32.totalorder %s110, %s113
      %p119 = scmp.eq.s32.totalorder %s12, 0
      %p120 = por %p118, %p119
      %p121 = scmp.ne.s32.totalorder %s110, %s113
      %p122 = scmp.eq.s32.totalorder %s17, 5
      %p123 = por %p121, %p122
      %p124 = scmp.ne.s32.totalorder %s113, %s114
      %p125 = scmp.eq.s32.totalorder %s17, 0
      %p126 = por %p124, %p125
      %p127 = scmp.ne.s32.totalorder %s113, %s114
      %p128 = scmp.eq.s32.totalorder %s18, 5
      %p129 = por %p127, %p128
      %p131 = scmp.ne.s32.totalorder %s114, %s130
      %p132 = scmp.eq.s32.totalorder %s18, 0
      %p133 = por %p131, %p132
      %p134 = scmp.le.s32.totalorder 1, %s12
      %p135 = scmp.lt.s32.totalorder %s12, 7
      %p136 = pnand %p134, %p135
      %p137 = pneg %p136
      // Predicated region
      $region9: #{tpu_custom_call.1} parent=5 // pred_check
        _
      $region10: #{tpu_custom_call.1} parent=5 // pred_check_branch
        %139 = sbr.rel (%p136) target = $region12
      $region11: #{tpu_custom_call.1} parent=5 // pred_region
        %s140 = ssub.s32 %s12, 1
        // Predicated region
        $region13: #{tpu_custom_call.1} parent=11 // pred_check
          %p141 = pneg %p75
        $region14: #{tpu_custom_call.1} parent=11 // pred_check_branch
          %143 = sbr.rel (%p141) target = $region16
        $region15: #{tpu_custom_call.1} parent=11 // pred_region
          _
        $region16: #{tpu_custom_call.1} parent=11 // pred_fallthru
          _
        // Predicated region
        $region17: #{tpu_custom_call.1} parent=11 // pred_check
          %p144 = pneg %p96
        $region18: #{tpu_custom_call.1} parent=11 // pred_check_branch
          %146 = sbr.rel (%p144) target = $region20
        $region19: #{tpu_custom_call.1} parent=11 // pred_region
          _
        $region20: #{tpu_custom_call.1} parent=11 // pred_fallthru
          _
      $region12: #{tpu_custom_call.1} parent=5 // pred_fallthru
        _
      %p147 = scmp.lt.s32.totalorder %s12, 6
      // Predicated region
      $region21: #{tpu_custom_call.1} parent=5 // pred_check
        %p148 = pneg %p147
      $region22: #{tpu_custom_call.1} parent=5 // pred_check_branch
        %150 = sbr.rel (%p148) target = $region24
      $region23: #{tpu_custom_call.1} parent=5 // pred_region
        // Predicated region
        $region25: #{tpu_custom_call.1} parent=23 // pred_check
          %p151 = pneg %p48
        $region26: #{tpu_custom_call.1} parent=23 // pred_check_branch
          %153 = sbr.rel (%p151) target = $region28
        $region27: #{tpu_custom_call.1} parent=23 // pred_region
          %s154 = sand.u32 %s38, 1
          %s155 = scalar_lea.sflag [#allocation5], %s154
          %s156 = sand.u32 %s38, 1
          %s157 = smul.addr %s156, 24
          %s158 = scalar_lea.vmem [#allocation4], %s157
          %s159 = smul.u32 %s19, 3
          %s160 = sadd.s32 %s159, %s20
          %162 = vsyncadd %s155, 0
          %s163 = smul.addr %s160, 3
          %s164 = smul.addr %s163, 8
          %s165 = scalar_lea.hbm %s0, %s164
          %s166 = sshll.u32 %s165, 4
          %s167 = int_to_ptr.hbm [resolvable:$true] %s166
          %s168 = sshll.u32 %s158, 4
          %s169 = int_to_ptr.vmem [resolvable:$true] %s168
          %174 = dma.hbm_to_vmem [thread:$0]  %s167, 384, %s169, %s155, 128, 128, 8
        $region28: #{tpu_custom_call.1} parent=23 // pred_fallthru
          _
      $region24: #{tpu_custom_call.1} parent=5 // pred_fallthru
        _
      %p175 = scmp.le.s32.totalorder 1, %s12
      %p176 = scmp.lt.s32.totalorder %s12, 7
      %p177 = pnand %p175, %p176
      %p178 = pneg %p177
      // Predicated region
      $region29: #{tpu_custom_call.1} parent=5 // pred_check
        _
      $region30: #{tpu_custom_call.1} parent=5 // pred_check_branch
        %180 = sbr.rel (%p177) target = $region32
      $region31: #{tpu_custom_call.1} parent=5 // pred_region
        %s181 = ssub.s32 %s12, 1
        %s182 = sand.u32 %s41, 1
        %s183 = scalar_lea.sflag [#allocation5], %s182
        %s184 = sand.u32 %s41, 1
        %s185 = smul.addr %s184, 24
        %s186 = scalar_lea.vmem [#allocation4], %s185
        // Predicated region
        $region33: #{tpu_custom_call.1} parent=31 // pred_check
          %p187 = pneg %p54
        $region34: #{tpu_custom_call.1} parent=31 // pred_check_branch
          %189 = sbr.rel (%p187) target = $region36
        $region35: #{tpu_custom_call.1} parent=31 // pred_region
          %191 = dma.done %s183, 384
        $region36: #{tpu_custom_call.1} parent=31 // pred_fallthru
          _
        %s192 = sand.u32 %s41, 1
        %s193 = scalar_lea.sflag [#allocation5], %s192
        %s194 = sand.u32 %s41, 1
        %s195 = smul.addr %s194, 24
        %s196 = scalar_lea.vmem [#allocation4], %s195
        %p197 = pneg %p54
        %p198 = pneg %p51
        %p199 = pneg %p75
        %p200 = pneg %p72
        %p201 = pneg %p96
        %p202 = pneg %p93
        %p203 = pneg %p126
        %p204 = pneg %p123
        %s205 = smul.u32 %s21, 3
        %s206 = sadd.s32 %s205, %s22
        %p207 = scmp.lt.s32.totalorder %s206, 5
        %s208 = scalar_select %p207, %s206, 5
        %s209 = smul.addr %s208, 4
        %s210 = smul.addr %s209, 8
        %s211 = scalar_lea.vmem %s3, %s210
        %s212 = smul.u32 %s21, 3
        %s213 = sadd.s32 %s212, %s22
        %s214 = smul.u32 %s21, 3
        %s215 = sadd.s32 %s214, %s22
        %p216 = scmp.lt.s32.totalorder %s215, 5
        %s217 = scalar_select %p216, %s215, 5
        %s218 = smul.addr %s217, 4
        %s219 = smul.addr %s218, 8
        %s220 = scalar_lea.vmem %s3, %s219
        %s221 = smul.u32 %s21, 3
        %s222 = sadd.s32 %s221, %s22
        %vm223 = vcmask 130048
        %224 = vst.msk [vmem:[#allocation3] sm:$0xff] %vm223, 0.0
        %225 = vst.msk [vmem:[#allocation3 + $0x8] sm:$0xff] %vm223, 0.0
        %226 = vst.msk [vmem:[#allocation3 + $0x10] sm:$0xff] %vm223, 0.0
        %227 = vst.msk [vmem:[#allocation3 + $0x18] sm:$0xff] %vm223, 0.0
        %228 = vst.msk [vmem:[#allocation2] sm:$0xff] %vm223, 0.0
        %229 = vst.msk [vmem:[#allocation2 + $0x8] sm:$0xff] %vm223, 0.0
        %230 = vst.msk [vmem:[#allocation2 + $0x10] sm:$0xff] %vm223, 0.0
        %231 = vst.msk [vmem:[#allocation2 + $0x18] sm:$0xff] %vm223, 0.0
        %v232 = vld [vmem:[%s1] sm:$0xff]
        %v233 = vld [vmem:[%s1 + $0x8] sm:$0xff]
        %v234 = vld [vmem:[%s1 + $0x10] sm:$0xff]
        %v235 = vld [vmem:[%s1 + $0x18] sm:$0xff]
        %v236 = vld [vmem:[%s2] sm:$0xff]
        %v237 = vld [vmem:[%s2 + $0x8] sm:$0xff]
        %v238 = vld [vmem:[%s2 + $0x10] sm:$0xff]
        %v239 = vld [vmem:[%s2 + $0x18] sm:$0xff]
        %s240 = smul.u32 %s22, 6
        %s241 = ssub.s32 16, %s240
        %p242 = scmp.lt.s32.totalorder %s241, 6
        %s243 = scalar_select %p242, %s241, 6
        %p244 = scmp.gt.s32.totalorder %s243, 0
        %s245 = scalar_select %p244, %s243, 0
        // While loop
        $region37: #{tpu_custom_call.1} parent=31 // loop_pre_header
          _
        $region38: #{tpu_custom_call.1} parent=31 // loop_header
          %s247 = sphi 0, %s249
          %p248 = scmp.ge.s32.totalorder %s247, %s245
        $region39: #{tpu_custom_call.1} parent=31 // loop_header_branch
          %251 = sbr.rel (%p248) target = $region43
        $region40: #{tpu_custom_call.1} parent=31 // loop_body
          %s252 = scalar_lea.vmem %s186, %s247 [#allocation4]
          %v253 = vld [vmem:[%s252] sm:$0x7]
          %vm254 = vcmask 124928
          %255 = vst.msk [vmem:[#allocation2] sm:$0x7] %vm254, %v253
          %v256 = vld [vmem:[%s252] sm:$0x7]
          %258 = vrot.lane.b32.xlu0 %v256, 127
          %v259 = vpop.permute.xlu0 %258
          %261 = vst.msk [vmem:[#allocation2 + $0x3] sm:$0x7] %vm254, %v259
          %v262 = vld [vmem:[%s252] sm:$0x7]
          %264 = vrot.lane.b32.xlu0 %v262, 126
          %v265 = vpop.permute.xlu0 %264
          %267 = vst.msk [vmem:[#allocation2 + $0x6] sm:$0x7] %vm254, %v265
          %s268 = sadd.s32 %s247, 8
          %s269 = scalar_lea.vmem %s186, %s268 [#allocation4]
          %v270 = vld [vmem:[%s269] sm:$0x7]
          %271 = vst.msk [vmem:[#allocation2 + $0x9] sm:$0x7] %vm254, %v270
          %v272 = vld [vmem:[%s269] sm:$0x7]
          %274 = vrot.lane.b32.xlu0 %v272, 127
          %v275 = vpop.permute.xlu0 %274
          %277 = vst.msk [vmem:[#allocation2 + $0xc] sm:$0x7] %vm254, %v275
          %v278 = vld [vmem:[%s269] sm:$0x7]
          %280 = vrot.lane.b32.xlu0 %v278, 126
          %v281 = vpop.permute.xlu0 %280
          %283 = vst.msk [vmem:[#allocation2 + $0xf] sm:$0x7] %vm254, %v281
          %s284 = sadd.s32 %s247, 16
          %s285 = scalar_lea.vmem %s186, %s284 [#allocation4]
          %v286 = vld [vmem:[%s285] sm:$0x7]
          %287 = vst.msk [vmem:[#allocation2 + $0x12] sm:$0x7] %vm254, %v286
          %v288 = vld [vmem:[%s285] sm:$0x7]
          %290 = vrot.lane.b32.xlu0 %v288, 127
          %v291 = vpop.permute.xlu0 %290
          %293 = vst.msk [vmem:[#allocation2 + $0x15] sm:$0x7] %vm254, %v291
          %v294 = vld [vmem:[%s285] sm:$0x7]
          %296 = vrot.lane.b32.xlu0 %v294, 126
          %v297 = vpop.permute.xlu0 %296
          %299 = vst.msk [vmem:[#allocation2 + $0x18] sm:$0x7] %vm254, %v297
          %v300 = vld [vmem:[#allocation2] sm:$0xff]
          %v301 = vld [vmem:[#allocation2 + $0x8] sm:$0xff]
          %v302 = vld [vmem:[#allocation2 + $0x10] sm:$0xff]
          %v303 = vld [vmem:[#allocation2 + $0x18] sm:$0xff]
          %305 = vset.pattern.permute.xlu0 0
          %306 = vperm.xlu0 %305, %v236
          %v307 = vpop.permute.xlu0 %306
          %310 = vset.pattern.permute.xlu0 0
          %311 = vperm.xlu0 %310, %v237
          %v312 = vpop.permute.xlu0 %311
          %315 = vset.pattern.permute.xlu0 0
          %316 = vperm.xlu0 %315, %v238
          %v317 = vpop.permute.xlu0 %316
          %320 = vset.pattern.permute.xlu0 0
          %321 = vperm.xlu0 %320, %v239
          %v322 = vpop.permute.xlu0 %321
          %vm324 = vcmask 261120
          %v326 = vsel %vm324, %v232, 0
          %v329 = vsel %vm324, %v233, 0
          %v332 = vsel %vm324, %v234, 0
          %v335 = vsel %vm324, %v235, 0
          %337 = vmatpush.msra.mxu0 0.0
          %338 = vmatpush.msra.mxu0 0.0
          %339 = vmatpush.msra.mxu0 0.0
          %340 = vmatpush.msra.mxu0 0.0
          %341 = vmatpush.msra.mxu0 0.0
          %342 = vmatpush.msra.mxu0 0.0
          %343 = vmatpush.msra.mxu0 0.0
          %344 = vmatpush.msra.mxu0 0.0
          %345 = vmatpush.msra.mxu0 0.0
          %346 = vmatpush.msra.mxu0 0.0
          %347 = vmatpush.msra.mxu0 0.0
          %348 = vmatpush.msra.mxu0 0.0
          %349 = vmatpush.msra.mxu0 %v303
          %350 = vmatpush.msra.mxu0 %v302
          %351 = vmatpush.msra.mxu0 %v301
          %352 = vmatpush.msra.mxu0 %v300
          %353 = vmatmul.f32.gmra.mxu0 %v326
          %v354 = vpop.f32.mrf.mxu0
          %v355 = vadd.f32 %v307, %v354
          %356 = vmatmul.f32.gmra.mxu0 %v329
          %v357 = vpop.f32.mrf.mxu0
          %v358 = vadd.f32 %v312, %v357
          %359 = vmatmul.f32.gmra.mxu0 %v332
          %v360 = vpop.f32.mrf.mxu0
          %v361 = vadd.f32 %v317, %v360
          %362 = vmatmul.f32.gmra.mxu0 %v335
          %v363 = vpop.f32.mrf.mxu0
          %v364 = vadd.f32 %v322, %v363
          %365 = vdwg.mxu0
          %v366 = vmax.f32 %v355, 0.0
          %v367 = vmax.f32 %v358, 0.0
          %v368 = vmax.f32 %v361, 0.0
          %v369 = vmax.f32 %v364, 0.0
          %v370 = vld [vmem:[#allocation3] sm:$0xff]
          %v371 = vld [vmem:[#allocation3 + $0x8] sm:$0xff]
          %v372 = vld [vmem:[#allocation3 + $0x10] sm:$0xff]
          %v373 = vld [vmem:[#allocation3 + $0x18] sm:$0xff]
          %v374 = vadd.f32 %v370, %v366
          %v375 = vadd.f32 %v371, %v367
          %v376 = vadd.f32 %v372, %v368
          %v377 = vadd.f32 %v373, %v369
          %378 = vst.msk [vmem:[#allocation3] sm:$0xff] %vm223, %v374
          %379 = vst.msk [vmem:[#allocation3 + $0x8] sm:$0xff] %vm223, %v375
          %380 = vst.msk [vmem:[#allocation3 + $0x10] sm:$0xff] %vm223, %v376
          %381 = vst.msk [vmem:[#allocation3 + $0x18] sm:$0xff] %vm223, %v377
        $region41: #{tpu_custom_call.1} parent=31 // loop_footer
          %s249 = sadd.s32 %s247, 1
        $region42: #{tpu_custom_call.1} parent=31 // loop_footer_branch
          %246 = sbr.rel target = $region38
        $region43: #{tpu_custom_call.1} parent=31 // loop_exit
          _
        %v382 = vld [vmem:[#allocation3] sm:$0xff]
        %v383 = vld [vmem:[#allocation3 + $0x8] sm:$0xff]
        %v384 = vld [vmem:[#allocation3 + $0x10] sm:$0xff]
        %v385 = vld [vmem:[#allocation3 + $0x18] sm:$0xff]
        %v386 = vsel %vm223, %v382, 0.0
        %387 = vadd.xlane.f32.xlu0 %v386
        %v388 = vpop.xlane.xlu0 %387
        %v389 = vsel %vm223, %v383, 0.0
        %390 = vadd.xlane.f32.xlu0 %v389
        %v391 = vpop.xlane.xlu0 %390
        %v392 = vsel %vm223, %v384, 0.0
        %393 = vadd.xlane.f32.xlu0 %v392
        %v394 = vpop.xlane.xlu0 %393
        %v395 = vsel %vm223, %v385, 0.0
        %396 = vadd.xlane.f32.xlu0 %v395
        %v397 = vpop.xlane.xlu0 %396
        %vm398 = vcmask 7168
        %399 = vst.msk [vmem:[%s220] sm:$0xff] %vm398, %v388
        %400 = vst.msk [vmem:[%s220 + $0x8] sm:$0xff] %vm398, %v391
        %401 = vst.msk [vmem:[%s220 + $0x10] sm:$0xff] %vm398, %v394
        %402 = vst.msk [vmem:[%s220 + $0x18] sm:$0xff] %vm398, %v397
        %s403 = smul.u32 %s21, 3
        %s404 = sadd.s32 %s403, %s22
        %p405 = scmp.lt.s32.totalorder %s404, 5
        %s406 = scalar_select %p405, %s404, 5
        %s407 = smul.addr %s406, 4
        %s408 = smul.addr %s407, 8
        %s409 = scalar_lea.vmem %s3, %s408
        // Predicated region
        $region44: #{tpu_custom_call.1} parent=31 // pred_check
          %p410 = pneg %p123
        $region45: #{tpu_custom_call.1} parent=31 // pred_check_branch
          %412 = sbr.rel (%p410) target = $region47
        $region46: #{tpu_custom_call.1} parent=31 // pred_region
          %s413 = smul.u32 %s21, 3
          %s414 = sadd.s32 %s413, %s22
        $region47: #{tpu_custom_call.1} parent=31 // pred_fallthru
          _
      $region32: #{tpu_custom_call.1} parent=5 // pred_fallthru
        _
      %p415 = scmp.le.s32.totalorder 2, %s12
      // Predicated region
      $region48: #{tpu_custom_call.1} parent=5 // pred_check
        %p416 = pneg %p415
      $region49: #{tpu_custom_call.1} parent=5 // pred_check_branch
        %418 = sbr.rel (%p416) target = $region51
      $region50: #{tpu_custom_call.1} parent=5 // pred_region
        %s419 = ssub.s32 %s12, 2
        // Predicated region
        $region52: #{tpu_custom_call.1} parent=50 // pred_check
          %p420 = pneg %p129
        $region53: #{tpu_custom_call.1} parent=50 // pred_check_branch
          %422 = sbr.rel (%p420) target = $region55
        $region54: #{tpu_custom_call.1} parent=50 // pred_region
          %s423 = smul.u32 %s23, 3
          %s424 = sadd.s32 %s423, %s24
          %p425 = scmp.lt.s32.totalorder %s424, 5
          %s426 = scalar_select %p425, %s424, 5
          %s427 = smul.addr %s426, 4
          %s428 = smul.addr %s427, 8
          %s429 = scalar_lea.vmem %s3, %s428
        $region55: #{tpu_custom_call.1} parent=50 // pred_fallthru
          _
      $region51: #{tpu_custom_call.1} parent=5 // pred_fallthru
        _
    $region6: #{tpu_custom_call.1} parent=1 // loop_footer
      %s16 = sadd.s32 1, %s12
    $region7: #{tpu_custom_call.1} parent=1 // loop_footer_branch
      %11 = sbr.rel target = $region3
    $region8: #{tpu_custom_call.1} parent=1 // loop_exit
      _
    %430 = vsyncpa [#allocation5], 1
    %s431 = scalar_lea.sflag [#allocation5], 1
    %432 = vsyncpa %s431, 1

</llo_original>
